<compile_context>
chip_gen: v7x
topology: tpu7x:2x2x1
jax: 0.10.0
libtpu: 0.0.40
codegen_flags: <defaults>
</compile_context>

<pallas_src>
import jax
import jax.numpy as jnp
from jax.experimental import pallas as pl
from jax.experimental.pallas import tpu as pltpu


def _round_up(x, m):
    return ((x + m - 1) // m) * m


def gcn_kernel(alpha_ref, adj_ref, x_ref, w_ref, o_ref):
    # alpha_ref: SMEM (1,) f32          -- PReLU slope
    # adj_ref:   VMEM (TM, N_pad)       -- row tile of adjacency (compute dtype)
    # x_ref:     VMEM (N_pad, in_pad)   -- full node features (compute dtype)
    # w_ref:     VMEM (in_pad, emb_pad) -- W^T, pre-transposed in the wrapper
    # o_ref:     VMEM (TM, emb_pad)
    #
    # xw = X @ W^T  (tiny K; recomputed per row tile -- negligible vs. the N^2 pass)
    xw = jnp.dot(x_ref[...], w_ref[...], preferred_element_type=jnp.float32)
    xw = xw.astype(adj_ref.dtype)
    # feat = A_rowtile @ (X W^T): emb-wide RHS keeps the dominant matmul lane-dense.
    feat = jnp.dot(adj_ref[...], xw, preferred_element_type=jnp.float32)
    # PReLU (single learnable slope), f32 math.
    a = alpha_ref[0]
    # dropout p=0 -> identity (module default).
    # TODO(synk): non-zero dropout would need pltpu.prng_seed / prng_random_bits masking.
    o_ref[...] = jnp.where(feat > 0.0, feat, a * feat).astype(o_ref.dtype)


def graph_convolution(graph, adjacency, weight, prelu_alpha, *,
                      tm=256, compute_dtype=jnp.bfloat16):
    """out[b] = PReLU( adjacency[b] @ graph[b] @ weight.T )

    graph:     [B, N, in_dims]
    adjacency: [B, N, N]
    weight:    [emb_dims, in_dims]   (PyTorch nn.Linear weight layout)
    returns    [B, N, emb_dims] in graph.dtype
    """
    B, N, in_dims = graph.shape
    emb_dims, w_in = weight.shape
    assert w_in == in_dims, "weight must be (emb_dims, in_dims) like nn.Linear.weight"

    cdt = jnp.dtype(compute_dtype)
    out_dtype = graph.dtype

    # Padded / tiled geometry.
    tm = _round_up(int(tm), 8)
    in_pad = _round_up(in_dims, 8)
    emb_pad = _round_up(emb_dims, 128)         # lane-dense output stores
    n8 = _round_up(N, 8)
    tm_eff = min(tm, n8)                       # row tile over nodes
    n_pad = _round_up(n8, tm_eff)
    num_row_tiles = n_pad // tm_eff

    # Exact zero padding + bf16 cast + one-time W transpose (free layout plumbing).
    adj_p = jnp.pad(adjacency.astype(cdt), ((0, 0), (0, n_pad - N), (0, n_pad - N)))
    x_p = jnp.pad(graph.astype(cdt), ((0, 0), (0, n_pad - N), (0, in_pad - in_dims)))
    w_p = jnp.pad(weight.T.astype(cdt), ((0, in_pad - in_dims), (0, emb_pad - emb_dims)))
    alpha = jnp.asarray(prelu_alpha, jnp.float32).reshape((1,))

    out_itemsize = jnp.dtype(out_dtype).itemsize
    cost = pl.CostEstimate(
        flops=2 * B * n_pad * n_pad * emb_pad
              + 2 * B * num_row_tiles * n_pad * in_pad * emb_pad,
        transcendentals=0,
        bytes_accessed=(B * n_pad * n_pad + B * n_pad * in_pad
                        + in_pad * emb_pad) * cdt.itemsize
                       + B * n_pad * emb_pad * out_itemsize,
    )

    out_p = pl.pallas_call(
        gcn_kernel,
        out_shape=jax.ShapeDtypeStruct((B, n_pad, emb_pad), out_dtype),
        grid_spec=pltpu.PrefetchScalarGridSpec(
            num_scalar_prefetch=0,
            grid=(B, num_row_tiles),
            in_specs=[
                pl.BlockSpec(memory_space=pltpu.MemorySpace.SMEM),            # alpha (1,)
                pl.BlockSpec((None, tm_eff, n_pad), lambda b, m: (b, m, 0)),  # A row tile
                pl.BlockSpec((None, n_pad, in_pad), lambda b, m: (b, 0, 0)),  # X (resident per batch)
                pl.BlockSpec((in_pad, emb_pad), lambda b, m: (0, 0)),         # W^T (resident)
            ],
            out_specs=pl.BlockSpec((None, tm_eff, emb_pad), lambda b, m: (b, m, 0)),
        ),
        compiler_params=pltpu.CompilerParams(
            dimension_semantics=("parallel", "parallel"),
            vmem_limit_bytes=32 * 1024 * 1024,   # safe on v5e/v6e (128 MiB) and v7x (64 MiB)
        ),
        cost_estimate=cost,
    )(alpha, adj_p, x_p, w_p)

    # Strip padding.
    return out_p[:, :N, :emb_dims]


if __name__ == "__main__":
    B, N, in_dims, emb_dims = 2, 16, 2, 16

    key = jax.random.PRNGKey(0)
    k_g, k_a, k_w = jax.random.split(key, 3)

    graph = jax.random.normal(k_g, (B, N, in_dims), dtype=jnp.float32)
    adjacency = jax.random.normal(k_a, (B, N, N), dtype=jnp.float32)
    # Deterministic synthetic params matching nn.Linear(in_dims, emb_dims, bias=False)
    bound = 1.0 / (in_dims ** 0.5)
    weight = jax.random.uniform(k_w, (emb_dims, in_dims), dtype=jnp.float32,
                                minval=-bound, maxval=bound)
    prelu_alpha = 0.25  # nn.PReLU default

    out = graph_convolution(graph, adjacency, weight, prelu_alpha)
    out = jax.block_until_ready(out)
    assert out.shape == (B, N, emb_dims)

    # Reference in plain JAX using the SAME bf16 input rounding + f32 accumulation
    # as the kernel (tolerance loosened accordingly vs. a pure-f32 reference).
    cd = jnp.bfloat16
    a32 = adjacency.astype(cd).astype(jnp.float32)
    x32 = graph.astype(cd).astype(jnp.float32)
    w32 = weight.astype(cd).astype(jnp.float32)
    xw = jnp.einsum("bni,ei->bne", x32, w32).astype(cd).astype(jnp.float32)
    feat = jnp.einsum("bnm,bme->bne", a32, xw)
    ref = jnp.where(feat > 0, feat, prelu_alpha * feat)

    assert jnp.allclose(out, ref, atol=2e-3, rtol=2e-3), (
        f"max abs err = {jnp.max(jnp.abs(out - ref))}")

    print("KERNEL_OK")
</pallas_src>

<mosaic_0001>
module attributes {stable_mosaic.version = 11 : i64} {
  func.func @gcn_kernel(%arg0: i32, %arg1: i32, %arg2: memref<1xf32, #tpu.memory_space<smem>>, %arg3: memref<1x16x16xbf16, #tpu.memory_space<vmem>>, %arg4: memref<1x16x8xbf16, #tpu.memory_space<vmem>>, %arg5: memref<8x128xbf16, #tpu.memory_space<vmem>>, %arg6: memref<1x16x128xf32, #tpu.memory_space<vmem>>) attributes {dimension_semantics = [#tpu.dimension_semantics<parallel>, #tpu.dimension_semantics<parallel>], iteration_bounds = array<i64: 2, 1>, scalar_prefetch = 0 : i64, scratch_operands = 0 : i64, tpu.core_type = #tpu.core_type<tc>, window_params = [{transform_indices = @transform_0, window_bounds = array<i64: 1>}, {transform_indices = @transform_1, window_bounds = array<i64: 1, 16, 16>}, {transform_indices = @transform_2, window_bounds = array<i64: 1, 16, 8>}, {pipeline_mode = #tpu.pipeline_mode<synchronous>, transform_indices = @transform_3, window_bounds = array<i64: 8, 128>}, {transform_indices = @transform_4, window_bounds = array<i64: 1, 16, 128>}]} {
    %c0 = arith.constant 0 : index
    %c0_0 = arith.constant 0 : index
    %c0_1 = arith.constant 0 : index
    %0 = vector.load %arg4[%c0, %c0_0, %c0_1] : memref<1x16x8xbf16, #tpu.memory_space<vmem>>, vector<1x16x8xbf16>
    %1 = vector.shape_cast %0 : vector<1x16x8xbf16> to vector<16x8xbf16>
    %c0_2 = arith.constant 0 : index
    %c0_3 = arith.constant 0 : index
    %2 = vector.load %arg5[%c0_2, %c0_3] : memref<8x128xbf16, #tpu.memory_space<vmem>>, vector<8x128xbf16>
    %cst = arith.constant dense<0.000000e+00> : vector<16x128xf32>
    %3 = tpu.matmul %1, %2, %cst {dimension_numbers = #tpu.dot_dimension_numbers<[1], [0], [0], [1], [0, 0, 1, 1], [], []>} : vector<16x8xbf16>, vector<8x128xbf16>, vector<16x128xf32> -> vector<16x128xf32>
    %4 = arith.truncf %3 : vector<16x128xf32> to vector<16x128xbf16>
    %c0_4 = arith.constant 0 : index
    %c0_5 = arith.constant 0 : index
    %c0_6 = arith.constant 0 : index
    %5 = vector.load %arg3[%c0_4, %c0_5, %c0_6] : memref<1x16x16xbf16, #tpu.memory_space<vmem>>, vector<1x16x16xbf16>
    %6 = vector.shape_cast %5 : vector<1x16x16xbf16> to vector<16x16xbf16>
    %cst_7 = arith.constant dense<0.000000e+00> : vector<16x128xf32>
    %7 = tpu.matmul %6, %4, %cst_7 {dimension_numbers = #tpu.dot_dimension_numbers<[1], [0], [0], [1], [0, 0, 1, 1], [], []>} : vector<16x16xbf16>, vector<16x128xbf16>, vector<16x128xf32> -> vector<16x128xf32>
    %c0_8 = arith.constant 0 : index
    %8 = memref.load %arg2[%c0_8] : memref<1xf32, #tpu.memory_space<smem>>
    %cst_9 = arith.constant 0.000000e+00 : f32
    %9 = vector.broadcast %cst_9 : f32 to vector<16x128xf32>
    %10 = arith.cmpf ogt, %7, %9 : vector<16x128xf32>
    %11 = vector.broadcast %8 : f32 to vector<16x128xf32>
    %12 = arith.mulf %11, %7 : vector<16x128xf32>
    %13 = arith.select %10, %7, %12 : vector<16x128xi1>, vector<16x128xf32>
    %c0_10 = arith.constant 0 : index
    %c0_11 = arith.constant 0 : index
    %c0_12 = arith.constant 0 : index
    %14 = vector.load %arg6[%c0_10, %c0_11, %c0_12] : memref<1x16x128xf32, #tpu.memory_space<vmem>>, vector<1x16x128xf32>
    %15 = vector.shape_cast %14 : vector<1x16x128xf32> to vector<16x128xf32>
    %16 = vector.shape_cast %13 : vector<16x128xf32> to vector<1x16x128xf32>
    tpu.vector_store %arg6[%c0_10, %c0_11, %c0_12], %16 {strides = array<i32>} : memref<1x16x128xf32, #tpu.memory_space<vmem>>, vector<1x16x128xf32>,
    return
  }
  func.func @transform_0(%arg0: i32, %arg1: i32) -> i32 {
    %c0_i32 = arith.constant 0 : i32
    %c0_i32_0 = arith.constant 0 : i32
    return %c0_i32 : i32
  }
  func.func @transform_1(%arg0: i32, %arg1: i32) -> (i32, i32, i32) {
    %c0_i32 = arith.constant 0 : i32
    %c0_i32_0 = arith.constant 0 : i32
    return %arg0, %arg1, %c0_i32 : i32, i32, i32
  }
  func.func @transform_2(%arg0: i32, %arg1: i32) -> (i32, i32, i32) {
    %c0_i32 = arith.constant 0 : i32
    %c0_i32_0 = arith.constant 0 : i32
    %c0_i32_1 = arith.constant 0 : i32
    return %arg0, %c0_i32, %c0_i32_0 : i32, i32, i32
  }
  func.func @transform_3(%arg0: i32, %arg1: i32) -> (i32, i32) {
    %c0_i32 = arith.constant 0 : i32
    %c0_i32_0 = arith.constant 0 : i32
    %c0_i32_1 = arith.constant 0 : i32
    return %c0_i32, %c0_i32_0 : i32, i32
  }
  func.func @transform_4(%arg0: i32, %arg1: i32) -> (i32, i32, i32) {
    %c0_i32 = arith.constant 0 : i32
    %c0_i32_0 = arith.constant 0 : i32
    return %arg0, %arg1, %c0_i32 : i32, i32, i32
  }
}

</mosaic_0001>

<llo_original>
// kernel: tpu_custom_call.1
$region0: #{tpu_custom_call.1}
  #allocation0 [shape = 'u32[]', space=smem, size = 0x4, offset = 0x4, fixed_abs, tag = 'smem constant byte address 0x4 - core index']
  #allocation1 [shape = 'u32[144,128]{1,0:T(1,128)}', space=vmem, size = 0x12000, scoped, tag = 'internal scratch']
  #allocation2 [shape = 'f32[1]{0:T(128)S(6)}', space=smem, size = 0x200, scoped, tag = 'scoped memory for tpu_custom_call.1']
  %s0 = inlined_call_operand.<no memory space> [shape: f32[1], index: 0, kind: input, shape index: {}]
  %s1 = inlined_call_operand.vmem [shape: bf16[2,16,16], index: 1, kind: input, shape index: {}]
  %s2 = inlined_call_operand.vmem [shape: bf16[2,16,8], index: 2, kind: input, shape index: {}]
  %s3 = inlined_call_operand.vmem [shape: bf16[8,128], index: 3, kind: input, shape index: {}]
  %s4 = inlined_call_operand.hbm [shape: f32[2,16,128], index: 4, kind: output, shape index: {}]
  %s5 = sld [smem:[#allocation0]]
  $region49: #{tpu_custom_call.1} parent=0
    _
  %s7 = ssub.s32 1, %s5
  %s8 = scalar_select 0, %s7, %s5
  %9 = sst [smem:[#allocation2]] %s0
  $region1: #{tpu_custom_call.1} parent=0
    #allocation3 [shape = 'u8[16384]{0}', space=vmem, size = 0x4000, scoped, tag = 'output window, operand 0']
    #allocation4 [shape = 's32[2]{0}', space=sflag, size = 0x8, scoped, tag = 'scoped memory for tpu_custom_call.1']
    %10 = vsyncpa [#allocation4], 0
    %s11 = scalar_lea.sflag [#allocation4], 1
    %12 = vsyncpa %s11, 0
    loop: start=0, step=1, limit=4
    $region2: #{tpu_custom_call.1} parent=1 // loop_pre_header
      _
    $region3: #{tpu_custom_call.1} parent=1 // loop_header
      %s14 = sphi 0, %s18
      %p15 = scmp.ge.s32.totalorder %s14, 4
      %s21 = sphi 0, %s33
      %s22 = sphi 0, %s29
      %s23 = sphi 0, %s21
      %s24 = sphi 0, %s22
      %s25 = sphi 0, %s23
      %s26 = sphi 0, %s24
      %s34 = sphi 0, %s34
      %s36 = sphi 0, %s34
      %s37 = sphi 0, %s36
      %s51 = sphi 0, %s37
      %s59 = sphi 0, %s61
      %s62 = sphi 0, %s59
      %s63 = sphi 0, %s62
      %s79 = sphi 0, %s63
      %s85 = sphi 0, %s87
      %s88 = sphi 0, %s85
      %s89 = sphi 0, %s88
      %s105 = sphi 0, %s89
      %s109 = sphi 0, %s109
      %s111 = sphi 0, %s109
      %s112 = sphi 0, %s111
      %s126 = sphi 0, %s112
      %s134 = sphi 0, %s136
      %s137 = sphi 0, %s134
      %s138 = sphi 0, %s137
      %s154 = sphi 0, %s138
    $region4: #{tpu_custom_call.1} parent=1 // loop_header_branch
      %17 = sbr.rel (%p15) target = $region8
    $region5: #{tpu_custom_call.1} parent=1 // loop_body
      %s19 = ssub.s32 %s14, 1
      %s20 = ssub.s32 %s14, 2
      %s27 = sadd.s32 1, %s22
      %p28 = scmp.ge.s32.totalorder %s27, 1
      %s29 = scalar_select %p28, 0, %s27
      %s30 = sadd.s32 1, %s21
      %s31 = scalar_select %p28, %s30, %s21
      %p32 = scmp.ge.s32.totalorder %s31, 2
      %s33 = scalar_select %p32, 0, %s31
      %s35 = sadd.s32 %s34, 1
      %p38 = scmp.eq.s32.totalorder %s14, 1
      %p39 = scmp.ne.s32.totalorder %s34, %s36
      %p40 = scmp.eq.s32.totalorder %s14, 0
      %p41 = por %p39, %p40
      %p42 = scmp.ne.s32.totalorder %s34, %s36
      %p43 = scmp.eq.s32.totalorder %s19, 1
      %p44 = por %p42, %p43
      %p45 = scmp.ne.s32.totalorder %s36, %s37
      %p46 = scmp.eq.s32.totalorder %s19, 0
      %p47 = por %p45, %p46
      %p48 = scmp.ne.s32.totalorder %s36, %s37
      %p49 = scmp.eq.s32.totalorder %s20, 1
      %p50 = por %p48, %p49
      %p52 = scmp.ne.s32.totalorder %s37, %s51
      %p53 = scmp.eq.s32.totalorder %s20, 0
      %p54 = por %p52, %p53
      %s55 = ssub.s32 %s21, %s33
      %s56 = ssub.s32 %s22, %s29
      %s57 = sor.u32 %s55, %s56
      %p58 = scmp.eq.s32.totalorder %s57, 0
      %s60 = sadd.s32 %s59, 1
      %s61 = scalar_select %p58, %s59, %s60
      %p64 = pneg %p58
      %p65 = scmp.eq.s32.totalorder %s14, 1
      %p66 = por %p64, %p65
      %p67 = scmp.ne.s32.totalorder %s59, %s62
      %p68 = scmp.eq.s32.totalorder %s14, 0
      %p69 = por %p67, %p68
      %p70 = scmp.ne.s32.totalorder %s59, %s62
      %p71 = scmp.eq.s32.totalorder %s19, 1
      %p72 = por %p70, %p71
      %p73 = scmp.ne.s32.totalorder %s62, %s63
      %p74 = scmp.eq.s32.totalorder %s19, 0
      %p75 = por %p73, %p74
      %p76 = scmp.ne.s32.totalorder %s62, %s63
      %p77 = scmp.eq.s32.totalorder %s20, 1
      %p78 = por %p76, %p77
      %p80 = scmp.ne.s32.totalorder %s63, %s79
      %p81 = scmp.eq.s32.totalorder %s20, 0
      %p82 = por %p80, %p81
      %s83 = ssub.s32 %s21, %s33
      %p84 = scmp.eq.s32.totalorder %s83, 0
      %s86 = sadd.s32 %s85, 1
      %s87 = scalar_select %p84, %s85, %s86
      %p90 = pneg %p84
      %p91 = scmp.eq.s32.totalorder %s14, 1
      %p92 = por %p90, %p91
      %p93 = scmp.ne.s32.totalorder %s85, %s88
      %p94 = scmp.eq.s32.totalorder %s14, 0
      %p95 = por %p93, %p94
      %p96 = scmp.ne.s32.totalorder %s85, %s88
      %p97 = scmp.eq.s32.totalorder %s19, 1
      %p98 = por %p96, %p97
      %p99 = scmp.ne.s32.totalorder %s88, %s89
      %p100 = scmp.eq.s32.totalorder %s19, 0
      %p101 = por %p99, %p100
      %p102 = scmp.ne.s32.totalorder %s88, %s89
      %p103 = scmp.eq.s32.totalorder %s20, 1
      %p104 = por %p102, %p103
      %p106 = scmp.ne.s32.totalorder %s89, %s105
      %p107 = scmp.eq.s32.totalorder %s20, 0
      %p108 = por %p106, %p107
      %s110 = sadd.s32 %s109, 1
      %p113 = scmp.eq.s32.totalorder %s14, 1
      %p114 = scmp.ne.s32.totalorder %s109, %s111
      %p115 = scmp.eq.s32.totalorder %s14, 0
      %p116 = por %p114, %p115
      %p117 = scmp.ne.s32.totalorder %s109, %s111
      %p118 = scmp.eq.s32.totalorder %s19, 1
      %p119 = por %p117, %p118
      %p120 = scmp.ne.s32.totalorder %s111, %s112
      %p121 = scmp.eq.s32.totalorder %s19, 0
      %p122 = por %p120, %p121
      %p123 = scmp.ne.s32.totalorder %s111, %s112
      %p124 = scmp.eq.s32.totalorder %s20, 1
      %p125 = por %p123, %p124
      %p127 = scmp.ne.s32.totalorder %s112, %s126
      %p128 = scmp.eq.s32.totalorder %s20, 0
      %p129 = por %p127, %p128
      %s130 = ssub.s32 %s21, %s33
      %s131 = ssub.s32 %s22, %s29
      %s132 = sor.u32 %s130, %s131
      %p133 = scmp.eq.s32.totalorder %s132, 0
      %s135 = sadd.s32 %s134, 1
      %s136 = scalar_select %p133, %s134, %s135
      %p139 = pneg %p133
      %p140 = scmp.eq.s32.totalorder %s14, 1
      %p141 = por %p139, %p140
      %p142 = scmp.ne.s32.totalorder %s134, %s137
      %p143 = scmp.eq.s32.totalorder %s14, 0
      %p144 = por %p142, %p143
      %p145 = scmp.ne.s32.totalorder %s134, %s137
      %p146 = scmp.eq.s32.totalorder %s19, 1
      %p147 = por %p145, %p146
      %p148 = scmp.ne.s32.totalorder %s137, %s138
      %p149 = scmp.eq.s32.totalorder %s19, 0
      %p150 = por %p148, %p149
      %p151 = scmp.ne.s32.totalorder %s137, %s138
      %p152 = scmp.eq.s32.totalorder %s20, 1
      %p153 = por %p151, %p152
      %p155 = scmp.ne.s32.totalorder %s138, %s154
      %p156 = scmp.eq.s32.totalorder %s20, 0
      %p157 = por %p155, %p156
      %p158 = scmp.le.s32.totalorder 1, %s14
      %p159 = scmp.lt.s32.totalorder %s14, 3
      %p160 = pnand %p158, %p159
      %p161 = pneg %p160
      // Predicated region
      $region9: #{tpu_custom_call.1} parent=5 // pred_check
        _
      $region10: #{tpu_custom_call.1} parent=5 // pred_check_branch
        %163 = sbr.rel (%p160) target = $region12
      $region11: #{tpu_custom_call.1} parent=5 // pred_region
        %s164 = ssub.s32 %s14, 1
        // Predicated region
        $region13: #{tpu_custom_call.1} parent=11 // pred_check
          %p165 = pneg %p47
        $region14: #{tpu_custom_call.1} parent=11 // pred_check_branch
          %167 = sbr.rel (%p165) target = $region16
        $region15: #{tpu_custom_call.1} parent=11 // pred_region
          _
        $region16: #{tpu_custom_call.1} parent=11 // pred_fallthru
          _
        // Predicated region
        $region17: #{tpu_custom_call.1} parent=11 // pred_check
          %p168 = pneg %p122
        $region18: #{tpu_custom_call.1} parent=11 // pred_check_branch
          %170 = sbr.rel (%p168) target = $region20
        $region19: #{tpu_custom_call.1} parent=11 // pred_region
          _
        $region20: #{tpu_custom_call.1} parent=11 // pred_fallthru
          _
      $region12: #{tpu_custom_call.1} parent=5 // pred_fallthru
        _
      %p171 = scmp.lt.s32.totalorder %s14, 2
      // Predicated region
      $region21: #{tpu_custom_call.1} parent=5 // pred_check
        %p172 = pneg %p171
      $region22: #{tpu_custom_call.1} parent=5 // pred_check_branch
        %174 = sbr.rel (%p172) target = $region24
      $region23: #{tpu_custom_call.1} parent=5 // pred_region
        // Predicated region
        $region25: #{tpu_custom_call.1} parent=23 // pred_check
          %p175 = pneg %p69
        $region26: #{tpu_custom_call.1} parent=23 // pred_check_branch
          %177 = sbr.rel (%p175) target = $region28
        $region27: #{tpu_custom_call.1} parent=23 // pred_region
          %s178 = smul.u32 2, %s22
          %p179 = scmp.lt.s32.totalorder %s21, 1
          %s180 = scalar_select %p179, %s21, 1
          %p181 = scmp.lt.s32.totalorder %s178, 1
          %s182 = scalar_select %p181, %s178, 1
          %s183 = smul.addr %s180, 2
          %s184 = sadd.s32 %s182, %s183
          %s185 = smul.addr %s184, 4
          %s186 = scalar_lea.vmem %s1, %s185
          %s187 = smul.u32 2, %s22
        $region28: #{tpu_custom_call.1} parent=23 // pred_fallthru
          _
        // Predicated region
        $region29: #{tpu_custom_call.1} parent=23 // pred_check
          %p188 = pneg %p95
        $region30: #{tpu_custom_call.1} parent=23 // pred_check_branch
          %190 = sbr.rel (%p188) target = $region32
        $region31: #{tpu_custom_call.1} parent=23 // pred_region
          %p191 = scmp.lt.s32.totalorder %s21, 1
          %s192 = scalar_select %p191, %s21, 1
          %s193 = smul.addr %s192, 2
          %s194 = smul.addr %s193, 4
          %s195 = scalar_lea.vmem %s2, %s194
        $region32: #{tpu_custom_call.1} parent=23 // pred_fallthru
          _
      $region24: #{tpu_custom_call.1} parent=5 // pred_fallthru
        _
      %p196 = scmp.le.s32.totalorder 1, %s14
      %p197 = scmp.lt.s32.totalorder %s14, 3
      %p198 = pnand %p196, %p197
      %p199 = pneg %p198
      // Predicated region
      $region33: #{tpu_custom_call.1} parent=5 // pred_check
        _
      $region34: #{tpu_custom_call.1} parent=5 // pred_check_branch
        %201 = sbr.rel (%p198) target = $region36
      $region35: #{tpu_custom_call.1} parent=5 // pred_region
        %s202 = ssub.s32 %s14, 1
        %p203 = pneg %p47
        %p204 = pneg %p44
        %s205 = smul.u32 2, %s24
        %p206 = scmp.lt.s32.totalorder %s23, 1
        %s207 = scalar_select %p206, %s23, 1
        %p208 = scmp.lt.s32.totalorder %s205, 1
        %s209 = scalar_select %p208, %s205, 1
        %s210 = smul.addr %s207, 2
        %s211 = sadd.s32 %s209, %s210
        %s212 = smul.addr %s211, 4
        %s213 = scalar_lea.vmem %s1, %s212
        %p214 = pneg %p75
        %p215 = pneg %p72
        %p216 = scmp.lt.s32.totalorder %s23, 1
        %s217 = scalar_select %p216, %s23, 1
        %s218 = smul.addr %s217, 2
        %s219 = smul.addr %s218, 4
        %s220 = scalar_lea.vmem %s2, %s219
        %p221 = pneg %p101
        %p222 = pneg %p98
        %p223 = pneg %p122
        %p224 = pneg %p119
        %p225 = pneg %p150
        %p226 = pneg %p147
        %s227 = sand.u32 %s137, 1
        %s228 = scalar_lea.sflag [#allocation4], %s227
        %s229 = sand.u32 %s137, 1
        %s230 = smul.addr %s229, 16
        %s231 = scalar_lea.vmem [#allocation3], %s230
        %s232 = smul.u32 2, %s24
        %p233 = scmp.lt.s32.totalorder %s23, 1
        %s234 = scalar_select %p233, %s23, 1
        %p235 = scmp.lt.s32.totalorder %s232, 1
        %s236 = scalar_select %p235, %s232, 1
        %s237 = smul.addr %s234, 2
        %s238 = sadd.s32 %s236, %s237
        %s239 = smul.addr %s238, 4
        %s240 = scalar_lea.vmem %s1, %s239
        %s241 = smul.u32 2, %s24
        %p242 = scmp.lt.s32.totalorder %s23, 1
        %s243 = scalar_select %p242, %s23, 1
        %s244 = smul.addr %s243, 2
        %s245 = smul.addr %s244, 4
        %s246 = scalar_lea.vmem %s2, %s245
        %s247 = smul.u32 2, %s24
        %v249 = vld [vmem:[%s246] sm:$0xf]
        %v250 = vld [vmem:[%s246 + $0x4] sm:$0xf]
        %v251 = vld [vmem:[%s3] sm:$0xf]
        %v254 = vunpack.c.l.b16 %v249
        %v255 = vunpack.c.l.b16 %v250
        %v256 = vpack.c.b16 %v255, %v254
        %vm257 = vcmask 64512
        %v259 = vsel %vm257, %v256, 0
        %vm261 = vcmask 1043456
        %v263 = vsel %vm261, %v251, 0
        %265 = vmatprep.subr.bf16.mxu0 0
        %266 = vmatpush1.bf16.msra.mxu0 %v263
        %267 = vmatprep.subr.bf16.mxu0 0
        %268 = vmatpush1.bf16.msra.mxu0 0
        %269 = vmatprep.subr.bf16.mxu0 0
        %270 = vmatpush1.bf16.msra.mxu0 0
        %271 = vmatprep.subr.bf16.mxu0 0
        %272 = vmatpush1.bf16.msra.mxu0 0
        %273 = vmatprep.subr.bf16.mxu0 0
        %274 = vmatpush1.bf16.msra.mxu0 0
        %275 = vmatprep.subr.bf16.mxu0 0
        %276 = vmatpush1.bf16.msra.mxu0 0
        %277 = vmatprep.subr.bf16.mxu0 0
        %278 = vmatpush1.bf16.msra.mxu0 0
        %279 = vmatprep.subr.bf16.mxu0 0
        %280 = vmatpush1.bf16.msra.mxu0 0
        %281 = vmatprep.subr.bf16.mxu0 0
        %282 = vmatpush1.bf16.msra.mxu0 0
        %283 = vmatprep.subr.bf16.mxu0 0
        %284 = vmatpush1.bf16.msra.mxu0 0
        %285 = vmatprep.subr.bf16.mxu0 0
        %286 = vmatpush1.bf16.msra.mxu0 0
        %287 = vmatprep.subr.bf16.mxu0 0
        %288 = vmatpush1.bf16.msra.mxu0 0
        %289 = vmatprep.subr.bf16.mxu0 0
        %290 = vmatpush1.bf16.msra.mxu0 0
        %291 = vmatprep.subr.bf16.mxu0 0
        %292 = vmatpush1.bf16.msra.mxu0 0
        %293 = vmatprep.subr.bf16.mxu0 0
        %294 = vmatpush1.bf16.msra.mxu0 0
        %295 = vmatprep.subr.bf16.mxu0 0
        %296 = vmatpush1.bf16.msra.mxu0 0
        %297 = vmatprep.mubr.bf16.mxu0 0
        %298 = vmatmul.mubr.bf16.gmra.mrb[0].mxu0 %v259
        %v299 = vpop.f32.mrb[0].mxu0
        %v300 = vadd.f32 0.0, %v299
        %v301 = vpop.f32.mrb[0].mxu0
        %v302 = vpop.f32.mrb[0].mxu0
        %v303 = vadd.f32 0.0, %v302
        %v304 = vpop.f32.mrb[0].mxu0
        %305 = vdwg.mxu0
        %v306 = vpack.c.bf16 %v303, %v300
        %v307 = vld [vmem:[%s240] sm:$0xf]
        %v308 = vld [vmem:[%s240 + $0x4] sm:$0xf]
        %v311 = vunpack.c.l.b16 %v307
        %v312 = vunpack.c.l.b16 %v308
        %v313 = vpack.c.b16 %v312, %v311
        %vm314 = vcmask 130048
        %v316 = vsel %vm314, %v313, 0
        %318 = vmatprep.subr.bf16.mxu0 0
        %319 = vmatpush1.bf16.msra.mxu0 %v306
        %320 = vmatprep.subr.bf16.mxu0 0
        %321 = vmatpush1.bf16.msra.mxu0 0
        %322 = vmatprep.subr.bf16.mxu0 0
        %323 = vmatpush1.bf16.msra.mxu0 0
        %324 = vmatprep.subr.bf16.mxu0 0
        %325 = vmatpush1.bf16.msra.mxu0 0
        %326 = vmatprep.subr.bf16.mxu0 0
        %327 = vmatpush1.bf16.msra.mxu0 0
        %328 = vmatprep.subr.bf16.mxu0 0
        %329 = vmatpush1.bf16.msra.mxu0 0
        %330 = vmatprep.subr.bf16.mxu0 0
        %331 = vmatpush1.bf16.msra.mxu0 0
        %332 = vmatprep.subr.bf16.mxu0 0
        %333 = vmatpush1.bf16.msra.mxu0 0
        %334 = vmatprep.subr.bf16.mxu0 0
        %335 = vmatpush1.bf16.msra.mxu0 0
        %336 = vmatprep.subr.bf16.mxu0 0
        %337 = vmatpush1.bf16.msra.mxu0 0
        %338 = vmatprep.subr.bf16.mxu0 0
        %339 = vmatpush1.bf16.msra.mxu0 0
        %340 = vmatprep.subr.bf16.mxu0 0
        %341 = vmatpush1.bf16.msra.mxu0 0
        %342 = vmatprep.subr.bf16.mxu0 0
        %343 = vmatpush1.bf16.msra.mxu0 0
        %344 = vmatprep.subr.bf16.mxu0 0
        %345 = vmatpush1.bf16.msra.mxu0 0
        %346 = vmatprep.subr.bf16.mxu0 0
        %347 = vmatpush1.bf16.msra.mxu0 0
        %348 = vmatprep.subr.bf16.mxu0 0
        %349 = vmatpush1.bf16.msra.mxu0 0
        %350 = vmatprep.mubr.bf16.mxu0 0
        %351 = vmatmul.mubr.bf16.gmra.mrb[0].mxu0 %v316
        %v352 = vpop.f32.mrb[0].mxu0
        %v353 = vadd.f32 0.0, %v352
        %v354 = vpop.f32.mrb[0].mxu0
        %v355 = vpop.f32.mrb[0].mxu0
        %v356 = vadd.f32 0.0, %v355
        %v357 = vpop.f32.mrb[0].mxu0
        %358 = vdwg.mxu0
        %s359 = sld [smem:[#allocation2]]
        %vm360 = vcmp.gt.f32.partialorder %v353, 0.0
        %vm361 = vcmp.gt.f32.partialorder %v356, 0.0
        %v362 = vstv %s359
        %v363 = vmul.f32 %v362, %v353
        %v364 = vmul.f32 %v362, %v356
        %v365 = vsel %vm360, %v353, %v363
        %v366 = vsel %vm361, %v356, %v364
        %367 = vst [vmem:[%s231] sm:$0xff] %v365
        %368 = vst [vmem:[%s231 + $0x8] sm:$0xff] %v366
        %s369 = sand.u32 %s137, 1
        %s370 = scalar_lea.sflag [#allocation4], %s369
        %s371 = sand.u32 %s137, 1
        %s372 = smul.addr %s371, 16
        %s373 = scalar_lea.vmem [#allocation3], %s372
        // Predicated region
        $region37: #{tpu_custom_call.1} parent=35 // pred_check
          %p374 = pneg %p147
        $region38: #{tpu_custom_call.1} parent=35 // pred_check_branch
          %376 = sbr.rel (%p374) target = $region40
        $region39: #{tpu_custom_call.1} parent=35 // pred_region
          %s377 = smul.u32 2, %s24
          %s379 = ssub.s32 256, 256
          %380 = vsyncadd %s370, %s379
          %s381 = smul.addr %s23, 2
          %s382 = sadd.s32 %s377, %s381
          %s383 = smul.addr %s382, 128
          %s384 = scalar_lea.hbm %s4, %s383
          %s385 = sshll.u32 %s373, 4
          %s386 = int_to_ptr.vmem [resolvable:$true] %s385
          %391 = dma.vmem_to_hbm [thread:$0]  %s386, 256, %s384, %s370, 128, 128, 8
        $region40: #{tpu_custom_call.1} parent=35 // pred_fallthru
          _
      $region36: #{tpu_custom_call.1} parent=5 // pred_fallthru
        _
      %p392 = scmp.le.s32.totalorder 2, %s14
      // Predicated region
      $region41: #{tpu_custom_call.1} parent=5 // pred_check
        %p393 = pneg %p392
      $region42: #{tpu_custom_call.1} parent=5 // pred_check_branch
        %395 = sbr.rel (%p393) target = $region44
      $region43: #{tpu_custom_call.1} parent=5 // pred_region
        %s396 = ssub.s32 %s14, 2
        // Predicated region
        $region45: #{tpu_custom_call.1} parent=43 // pred_check
          %p397 = pneg %p153
        $region46: #{tpu_custom_call.1} parent=43 // pred_check_branch
          %399 = sbr.rel (%p397) target = $region48
        $region47: #{tpu_custom_call.1} parent=43 // pred_region
          %s400 = sand.u32 %s138, 1
          %s401 = scalar_lea.sflag [#allocation4], %s400
          %s402 = sand.u32 %s138, 1
          %s403 = smul.addr %s402, 16
          %s404 = scalar_lea.vmem [#allocation3], %s403
          %405 = dma.done %s401, 256
        $region48: #{tpu_custom_call.1} parent=43 // pred_fallthru
          _
      $region44: #{tpu_custom_call.1} parent=5 // pred_fallthru
        _
    $region6: #{tpu_custom_call.1} parent=1 // loop_footer
      %s18 = sadd.s32 1, %s14
    $region7: #{tpu_custom_call.1} parent=1 // loop_footer_branch
      %13 = sbr.rel target = $region3
    $region8: #{tpu_custom_call.1} parent=1 // loop_exit
      _
    %406 = vsyncpa [#allocation4], 1
    %s407 = scalar_lea.sflag [#allocation4], 1
    %408 = vsyncpa %s407, 1

</llo_original>
